<compile_context>
chip_gen: v7x
topology: tpu7x:2x2x1
jax: 0.10.0
libtpu: 0.0.40
codegen_flags: <defaults>
</compile_context>

<pallas_src>
import jax
import jax.numpy as jnp
from jax.experimental import pallas as pl
from jax.experimental.pallas import tpu as pltpu


def _make_prompt_kernel(n_ctx, n_branch, n_suffix, cb, ctx_dim):
    """Kernel assembling one block of `cb` classes, all branches at once."""

    def kernel(prefix_ref, suffix_ref, ctx_all_ref, out_ref):
        # prefix_ref : (cb, 1, D)            per-class SOS/prefix embedding
        # suffix_ref : (cb, n_suffix, D)     per-class name + EOS embeddings
        # ctx_all_ref: (n_branch, n_ctx, D)  [ctx ; ctx_space] (hoisted concat)
        # out_ref    : (cb, n_branch, seq_len, D)
        pre = prefix_ref[...]                       # (cb, 1, D)
        suf = suffix_ref[...]                       # (cb, n_suffix, D)

        # n_branch = space_dim + 1 is small (e.g. 4) -> static unroll.
        # Direct slice stores: pure vst traffic, no full-tile materialization.
        for b in range(n_branch):
            out_ref[:, b:b + 1, 0:1, :] = pre[:, None]
            out_ref[:, b:b + 1, 1:1 + n_ctx, :] = jnp.broadcast_to(
                ctx_all_ref[b:b + 1][None], (cb, 1, n_ctx, ctx_dim))
            out_ref[:, b:b + 1, 1 + n_ctx:, :] = suf[:, None]

    return kernel


def subspace_prompt_learner_forward(token_prefix, token_suffix, ctx, ctx_space,
                                    *, class_block=None, out_dtype=None,
                                    vmem_budget_bytes=32 << 20):
    """Pallas implementation of SubspacePromptLearner.forward().

    token_prefix: (n_cls, 1, ctx_dim)
    token_suffix: (n_cls, seq_len - 1 - n_ctx, ctx_dim)
    ctx         : (n_ctx, ctx_dim)
    ctx_space   : (space_dim, n_ctx, ctx_dim)
    returns     : (n_cls, space_dim + 1, seq_len, ctx_dim)
    """
    n_cls, n_pre, ctx_dim = token_prefix.shape
    assert n_pre == 1, "token_prefix must contain exactly the SOS token"
    n_ctx = ctx.shape[0]
    space_dim = ctx_space.shape[0]
    n_suffix = token_suffix.shape[1]
    seq_len = 1 + n_ctx + n_suffix
    n_branch = space_dim + 1

    # Explicit dtype handling (token embeddings may be bf16 while ctx is f32).
    if out_dtype is None:
        out_dtype = jnp.result_type(token_prefix.dtype, token_suffix.dtype,
                                    ctx.dtype, ctx_space.dtype)
    prefix = token_prefix.astype(out_dtype)
    suffix = token_suffix.astype(out_dtype)
    # One-time tiny XLA op, hoisted out of the sequential grid loop.
    ctx_all = jnp.concatenate([ctx[None], ctx_space], axis=0).astype(out_dtype)

    # Auto-size the per-step class block against a VMEM budget (covers the
    # double-buffered input + output tiles); safe on v7x's 64 MiB VMEM.
    itemsize = jnp.dtype(out_dtype).itemsize
    per_class_bytes = (n_branch * seq_len + 1 + n_suffix) * ctx_dim * itemsize
    if class_block is None:
        cb = max(1, vmem_budget_bytes // (2 * per_class_bytes))
        cb = int(min(cb, n_cls))
    else:
        cb = int(min(class_block, n_cls))

    n_blocks = pl.cdiv(n_cls, cb)
    n_cls_pad = n_blocks * cb
    if n_cls_pad != n_cls:
        pad = n_cls_pad - n_cls
        prefix = jnp.pad(prefix, ((0, pad), (0, 0), (0, 0)))
        suffix = jnp.pad(suffix, ((0, pad), (0, 0), (0, 0)))

    kernel = _make_prompt_kernel(n_ctx, n_branch, n_suffix, cb, ctx_dim)

    grid_spec = pltpu.PrefetchScalarGridSpec(
        num_scalar_prefetch=0,
        grid=(n_blocks,),
        in_specs=[
            # per-class prefix / suffix tiles (cb classes per step)
            pl.BlockSpec((cb, 1, ctx_dim), lambda i: (i, 0, 0)),
            pl.BlockSpec((cb, n_suffix, ctx_dim), lambda i: (i, 0, 0)),
            # shared (class-invariant) stacked contexts: same block every step
            pl.BlockSpec((n_branch, n_ctx, ctx_dim), lambda i: (0, 0, 0)),
        ],
        out_specs=pl.BlockSpec((cb, n_branch, seq_len, ctx_dim),
                               lambda i: (i, 0, 0, 0)),
    )

    vmem_limit = int(max(2 * cb * per_class_bytes + (4 << 20), 16 << 20))

    out = pl.pallas_call(
        kernel,
        out_shape=jax.ShapeDtypeStruct(
            (n_cls_pad, n_branch, seq_len, ctx_dim), out_dtype),
        grid_spec=grid_spec,
        compiler_params=pltpu.CompilerParams(
            dimension_semantics=("parallel",),
            vmem_limit_bytes=vmem_limit,
        ),
    )(prefix, suffix, ctx_all)

    if n_cls_pad != n_cls:
        out = out[:n_cls]
    return out


def reference_forward(token_prefix, token_suffix, ctx, ctx_space):
    """Pure-JAX reference mirroring the PyTorch forward."""
    n_cls = token_prefix.shape[0]
    space_dim = ctx_space.shape[0]
    n_branch = space_dim + 1
    dtype = jnp.result_type(token_prefix.dtype, token_suffix.dtype,
                            ctx.dtype, ctx_space.dtype)
    ctx_b = jnp.broadcast_to(ctx[None], (n_cls,) + ctx.shape)
    all_ctx = [ctx_b] + [
        jnp.broadcast_to(ctx_space[i][None], (n_cls,) + ctx.shape)
        for i in range(space_dim)
    ]
    ctx_stacked = jnp.stack(all_ctx, axis=1).astype(dtype)
    prefix = jnp.broadcast_to(token_prefix[:, None],
                              (n_cls, n_branch) + token_prefix.shape[1:])
    suffix = jnp.broadcast_to(token_suffix[:, None],
                              (n_cls, n_branch) + token_suffix.shape[1:])
    return jnp.concatenate(
        [prefix.astype(dtype), ctx_stacked, suffix.astype(dtype)], axis=2)


if __name__ == "__main__":
    # Small synthetic configuration (shapes consistent with the module).
    n_cls = 10         # number of classes
    n_ctx = 4          # N_CTX_TEXT
    space_dim = 3      # SPACE_DIM  -> space_dim + 1 = 4 prompt branches
    ctx_dim = 128      # text embedding width (lane-dense; real CLIP = 512)
    seq_len = 16       # total tokenized prompt length
    n_suffix = seq_len - 1 - n_ctx
    dtype = jnp.float32

    key = jax.random.PRNGKey(0)
    k_pre, k_suf, k_ctx, k_spc = jax.random.split(key, 4)

    # Deterministic stand-ins for token_embedding outputs (buffers) and the
    # learnable parameters (nn.init.normal_(std=0.02)).
    token_prefix = jax.random.normal(k_pre, (n_cls, 1, ctx_dim), dtype)
    token_suffix = jax.random.normal(k_suf, (n_cls, n_suffix, ctx_dim), dtype)
    ctx = 0.02 * jax.random.normal(k_ctx, (n_ctx, ctx_dim), dtype)
    ctx_space = 0.02 * jax.random.normal(k_spc, (space_dim, n_ctx, ctx_dim),
                                         dtype)
    # TODO(synk): hard_prompt_feature / tokenization / CLIP text-encoder setup
    # happen in __init__ (need a full CLIP model) and are not part of forward().

    ref = reference_forward(token_prefix, token_suffix, ctx, ctx_space)

    # Auto class-block (entire class set in one grid step at this size).
    out_auto = subspace_prompt_learner_forward(token_prefix, token_suffix,
                                               ctx, ctx_space)
    out_auto = jax.block_until_ready(out_auto)

    # Forced small class block: exercises the multi-step grid + padding path.
    out_blocked = subspace_prompt_learner_forward(token_prefix, token_suffix,
                                                  ctx, ctx_space,
                                                  class_block=4)
    out_blocked = jax.block_until_ready(out_blocked)

    assert out_auto.shape == (n_cls, space_dim + 1, seq_len, ctx_dim)
    assert jnp.allclose(out_auto, ref), "auto-blocked kernel mismatch vs. ref"
    assert jnp.allclose(out_blocked, ref), "class_block=4 kernel mismatch"

    print("KERNEL_OK")
</pallas_src>

<mosaic_0001>
module attributes {stable_mosaic.version = 11 : i64} {
  func.func @kernel(%arg0: i32, %arg1: memref<10x1x128xf32, #tpu.memory_space<vmem>>, %arg2: memref<10x11x128xf32, #tpu.memory_space<vmem>>, %arg3: memref<4x4x128xf32, #tpu.memory_space<vmem>>, %arg4: memref<10x4x16x128xf32, #tpu.memory_space<vmem>>) attributes {dimension_semantics = [#tpu.dimension_semantics<parallel>], iteration_bounds = array<i64: 1>, scalar_prefetch = 0 : i64, scratch_operands = 0 : i64, tpu.core_type = #tpu.core_type<tc>, window_params = [{transform_indices = @transform_0, window_bounds = array<i64: 10, 1, 128>}, {transform_indices = @transform_1, window_bounds = array<i64: 10, 11, 128>}, {pipeline_mode = #tpu.pipeline_mode<synchronous>, transform_indices = @transform_2, window_bounds = array<i64: 4, 4, 128>}, {transform_indices = @transform_3, window_bounds = array<i64: 10, 4, 16, 128>}]} {
    %c0 = arith.constant 0 : index
    %c0_0 = arith.constant 0 : index
    %c0_1 = arith.constant 0 : index
    %0 = vector.load %arg1[%c0, %c0_0, %c0_1] : memref<10x1x128xf32, #tpu.memory_space<vmem>>, vector<10x1x128xf32>
    %c0_2 = arith.constant 0 : index
    %c0_3 = arith.constant 0 : index
    %c0_4 = arith.constant 0 : index
    %1 = vector.load %arg2[%c0_2, %c0_3, %c0_4] : memref<10x11x128xf32, #tpu.memory_space<vmem>>, vector<10x11x128xf32>
    %2 = vector.shape_cast %0 : vector<10x1x128xf32> to vector<10x1x1x128xf32>
    %c0_5 = arith.constant 0 : index
    %c0_6 = arith.constant 0 : index
    %c0_7 = arith.constant 0 : index
    %c0_8 = arith.constant 0 : index
    %3 = vector.load %arg4[%c0_5, %c0_6, %c0_7, %c0_8] : memref<10x4x16x128xf32, #tpu.memory_space<vmem>>, vector<10x1x1x128xf32>
    tpu.vector_store %arg4[%c0_5, %c0_6, %c0_7, %c0_8], %2 {strides = array<i32>} : memref<10x4x16x128xf32, #tpu.memory_space<vmem>>, vector<10x1x1x128xf32>,
    %c0_9 = arith.constant 0 : index
    %c0_10 = arith.constant 0 : index
    %c0_11 = arith.constant 0 : index
    %4 = vector.load %arg3[%c0_9, %c0_10, %c0_11] : memref<4x4x128xf32, #tpu.memory_space<vmem>>, vector<1x4x128xf32>
    %5 = vector.shape_cast %4 : vector<1x4x128xf32> to vector<1x1x4x128xf32>
    %6 = vector.shape_cast %5 : vector<1x1x4x128xf32> to vector<1x1x4x128xf32>
    %7 = vector.broadcast %6 : vector<1x1x4x128xf32> to vector<10x1x4x128xf32>
    %c0_12 = arith.constant 0 : index
    %c0_13 = arith.constant 0 : index
    %c1 = arith.constant 1 : index
    %c0_14 = arith.constant 0 : index
    %8 = vector.load %arg4[%c0_12, %c0_13, %c1, %c0_14] : memref<10x4x16x128xf32, #tpu.memory_space<vmem>>, vector<10x1x4x128xf32>
    tpu.vector_store %arg4[%c0_12, %c0_13, %c1, %c0_14], %7 {strides = array<i32>} : memref<10x4x16x128xf32, #tpu.memory_space<vmem>>, vector<10x1x4x128xf32>,
    %9 = vector.shape_cast %1 : vector<10x11x128xf32> to vector<10x1x11x128xf32>
    %c0_15 = arith.constant 0 : index
    %c0_16 = arith.constant 0 : index
    %c5 = arith.constant 5 : index
    %c0_17 = arith.constant 0 : index
    %10 = vector.load %arg4[%c0_15, %c0_16, %c5, %c0_17] : memref<10x4x16x128xf32, #tpu.memory_space<vmem>>, vector<10x1x11x128xf32>
    tpu.vector_store %arg4[%c0_15, %c0_16, %c5, %c0_17], %9 {strides = array<i32>} : memref<10x4x16x128xf32, #tpu.memory_space<vmem>>, vector<10x1x11x128xf32>,
    %11 = vector.shape_cast %0 : vector<10x1x128xf32> to vector<10x1x1x128xf32>
    %c0_18 = arith.constant 0 : index
    %c1_19 = arith.constant 1 : index
    %c0_20 = arith.constant 0 : index
    %c0_21 = arith.constant 0 : index
    %12 = vector.load %arg4[%c0_18, %c1_19, %c0_20, %c0_21] : memref<10x4x16x128xf32, #tpu.memory_space<vmem>>, vector<10x1x1x128xf32>
    tpu.vector_store %arg4[%c0_18, %c1_19, %c0_20, %c0_21], %11 {strides = array<i32>} : memref<10x4x16x128xf32, #tpu.memory_space<vmem>>, vector<10x1x1x128xf32>,
    %c1_22 = arith.constant 1 : index
    %c0_23 = arith.constant 0 : index
    %c0_24 = arith.constant 0 : index
    %13 = vector.load %arg3[%c1_22, %c0_23, %c0_24] : memref<4x4x128xf32, #tpu.memory_space<vmem>>, vector<1x4x128xf32>
    %14 = vector.shape_cast %13 : vector<1x4x128xf32> to vector<1x1x4x128xf32>
    %15 = vector.shape_cast %14 : vector<1x1x4x128xf32> to vector<1x1x4x128xf32>
    %16 = vector.broadcast %15 : vector<1x1x4x128xf32> to vector<10x1x4x128xf32>
    %c0_25 = arith.constant 0 : index
    %c1_26 = arith.constant 1 : index
    %c1_27 = arith.constant 1 : index
    %c0_28 = arith.constant 0 : index
    %17 = vector.load %arg4[%c0_25, %c1_26, %c1_27, %c0_28] : memref<10x4x16x128xf32, #tpu.memory_space<vmem>>, vector<10x1x4x128xf32>
    tpu.vector_store %arg4[%c0_25, %c1_26, %c1_27, %c0_28], %16 {strides = array<i32>} : memref<10x4x16x128xf32, #tpu.memory_space<vmem>>, vector<10x1x4x128xf32>,
    %18 = vector.shape_cast %1 : vector<10x11x128xf32> to vector<10x1x11x128xf32>
    %c0_29 = arith.constant 0 : index
    %c1_30 = arith.constant 1 : index
    %c5_31 = arith.constant 5 : index
    %c0_32 = arith.constant 0 : index
    %19 = vector.load %arg4[%c0_29, %c1_30, %c5_31, %c0_32] : memref<10x4x16x128xf32, #tpu.memory_space<vmem>>, vector<10x1x11x128xf32>
    tpu.vector_store %arg4[%c0_29, %c1_30, %c5_31, %c0_32], %18 {strides = array<i32>} : memref<10x4x16x128xf32, #tpu.memory_space<vmem>>, vector<10x1x11x128xf32>,
    %20 = vector.shape_cast %0 : vector<10x1x128xf32> to vector<10x1x1x128xf32>
    %c0_33 = arith.constant 0 : index
    %c2 = arith.constant 2 : index
    %c0_34 = arith.constant 0 : index
    %c0_35 = arith.constant 0 : index
    %21 = vector.load %arg4[%c0_33, %c2, %c0_34, %c0_35] : memref<10x4x16x128xf32, #tpu.memory_space<vmem>>, vector<10x1x1x128xf32>
    tpu.vector_store %arg4[%c0_33, %c2, %c0_34, %c0_35], %20 {strides = array<i32>} : memref<10x4x16x128xf32, #tpu.memory_space<vmem>>, vector<10x1x1x128xf32>,
    %c2_36 = arith.constant 2 : index
    %c0_37 = arith.constant 0 : index
    %c0_38 = arith.constant 0 : index
    %22 = vector.load %arg3[%c2_36, %c0_37, %c0_38] : memref<4x4x128xf32, #tpu.memory_space<vmem>>, vector<1x4x128xf32>
    %23 = vector.shape_cast %22 : vector<1x4x128xf32> to vector<1x1x4x128xf32>
    %24 = vector.shape_cast %23 : vector<1x1x4x128xf32> to vector<1x1x4x128xf32>
    %25 = vector.broadcast %24 : vector<1x1x4x128xf32> to vector<10x1x4x128xf32>
    %c0_39 = arith.constant 0 : index
    %c2_40 = arith.constant 2 : index
    %c1_41 = arith.constant 1 : index
    %c0_42 = arith.constant 0 : index
    %26 = vector.load %arg4[%c0_39, %c2_40, %c1_41, %c0_42] : memref<10x4x16x128xf32, #tpu.memory_space<vmem>>, vector<10x1x4x128xf32>
    tpu.vector_store %arg4[%c0_39, %c2_40, %c1_41, %c0_42], %25 {strides = array<i32>} : memref<10x4x16x128xf32, #tpu.memory_space<vmem>>, vector<10x1x4x128xf32>,
    %27 = vector.shape_cast %1 : vector<10x11x128xf32> to vector<10x1x11x128xf32>
    %c0_43 = arith.constant 0 : index
    %c2_44 = arith.constant 2 : index
    %c5_45 = arith.constant 5 : index
    %c0_46 = arith.constant 0 : index
    %28 = vector.load %arg4[%c0_43, %c2_44, %c5_45, %c0_46] : memref<10x4x16x128xf32, #tpu.memory_space<vmem>>, vector<10x1x11x128xf32>
    tpu.vector_store %arg4[%c0_43, %c2_44, %c5_45, %c0_46], %27 {strides = array<i32>} : memref<10x4x16x128xf32, #tpu.memory_space<vmem>>, vector<10x1x11x128xf32>,
    %29 = vector.shape_cast %0 : vector<10x1x128xf32> to vector<10x1x1x128xf32>
    %c0_47 = arith.constant 0 : index
    %c3 = arith.constant 3 : index
    %c0_48 = arith.constant 0 : index
    %c0_49 = arith.constant 0 : index
    %30 = vector.load %arg4[%c0_47, %c3, %c0_48, %c0_49] : memref<10x4x16x128xf32, #tpu.memory_space<vmem>>, vector<10x1x1x128xf32>
    tpu.vector_store %arg4[%c0_47, %c3, %c0_48, %c0_49], %29 {strides = array<i32>} : memref<10x4x16x128xf32, #tpu.memory_space<vmem>>, vector<10x1x1x128xf32>,
    %c3_50 = arith.constant 3 : index
    %c0_51 = arith.constant 0 : index
    %c0_52 = arith.constant 0 : index
    %31 = vector.load %arg3[%c3_50, %c0_51, %c0_52] : memref<4x4x128xf32, #tpu.memory_space<vmem>>, vector<1x4x128xf32>
    %32 = vector.shape_cast %31 : vector<1x4x128xf32> to vector<1x1x4x128xf32>
    %33 = vector.shape_cast %32 : vector<1x1x4x128xf32> to vector<1x1x4x128xf32>
    %34 = vector.broadcast %33 : vector<1x1x4x128xf32> to vector<10x1x4x128xf32>
    %c0_53 = arith.constant 0 : index
    %c3_54 = arith.constant 3 : index
    %c1_55 = arith.constant 1 : index
    %c0_56 = arith.constant 0 : index
    %35 = vector.load %arg4[%c0_53, %c3_54, %c1_55, %c0_56] : memref<10x4x16x128xf32, #tpu.memory_space<vmem>>, vector<10x1x4x128xf32>
    tpu.vector_store %arg4[%c0_53, %c3_54, %c1_55, %c0_56], %34 {strides = array<i32>} : memref<10x4x16x128xf32, #tpu.memory_space<vmem>>, vector<10x1x4x128xf32>,
    %36 = vector.shape_cast %1 : vector<10x11x128xf32> to vector<10x1x11x128xf32>
    %c0_57 = arith.constant 0 : index
    %c3_58 = arith.constant 3 : index
    %c5_59 = arith.constant 5 : index
    %c0_60 = arith.constant 0 : index
    %37 = vector.load %arg4[%c0_57, %c3_58, %c5_59, %c0_60] : memref<10x4x16x128xf32, #tpu.memory_space<vmem>>, vector<10x1x11x128xf32>
    tpu.vector_store %arg4[%c0_57, %c3_58, %c5_59, %c0_60], %36 {strides = array<i32>} : memref<10x4x16x128xf32, #tpu.memory_space<vmem>>, vector<10x1x11x128xf32>,
    return
  }
  func.func @transform_0(%arg0: i32) -> (i32, i32, i32) {
    %c0_i32 = arith.constant 0 : i32
    %c0_i32_0 = arith.constant 0 : i32
    %c0_i32_1 = arith.constant 0 : i32
    return %arg0, %c0_i32, %c0_i32_0 : i32, i32, i32
  }
  func.func @transform_1(%arg0: i32) -> (i32, i32, i32) {
    %c0_i32 = arith.constant 0 : i32
    %c0_i32_0 = arith.constant 0 : i32
    %c0_i32_1 = arith.constant 0 : i32
    return %arg0, %c0_i32, %c0_i32_0 : i32, i32, i32
  }
  func.func @transform_2(%arg0: i32) -> (i32, i32, i32) {
    %c0_i32 = arith.constant 0 : i32
    %c0_i32_0 = arith.constant 0 : i32
    %c0_i32_1 = arith.constant 0 : i32
    %c0_i32_2 = arith.constant 0 : i32
    return %c0_i32, %c0_i32_0, %c0_i32_1 : i32, i32, i32
  }
  func.func @transform_3(%arg0: i32) -> (i32, i32, i32, i32) {
    %c0_i32 = arith.constant 0 : i32
    %c0_i32_0 = arith.constant 0 : i32
    %c0_i32_1 = arith.constant 0 : i32
    %c0_i32_2 = arith.constant 0 : i32
    return %arg0, %c0_i32, %c0_i32_0, %c0_i32_1 : i32, i32, i32, i32
  }
}

</mosaic_0001>

<llo_original>
// kernel: tpu_custom_call.1
$region0: #{tpu_custom_call.1}
  #allocation0 [shape = 'u32[]', space=smem, size = 0x4, offset = 0x4, fixed_abs, tag = 'smem constant byte address 0x4 - core index']
  #allocation1 [shape = 'u32[144,128]{1,0:T(1,128)}', space=vmem, size = 0x12000, scoped, tag = 'internal scratch']
  %s0 = inlined_call_operand.hbm [shape: f32[10,1,128], index: 0, kind: input, shape index: {}]
  %s1 = inlined_call_operand.hbm [shape: f32[10,11,128], index: 1, kind: input, shape index: {}]
  %s2 = inlined_call_operand.hbm [shape: f32[4,4,128], index: 2, kind: input, shape index: {}]
  %s3 = inlined_call_operand.hbm [shape: f32[10,4,16,128], index: 3, kind: output, shape index: {}]
  %s4 = sld [smem:[#allocation0]]
  $region34: #{tpu_custom_call.1} parent=0
    _
  %s6 = ssub.s32 1, %s4
  %s7 = scalar_select 0, %s6, %s4
  $region1: #{tpu_custom_call.1} parent=0
    #allocation2 [shape = 'u8[5120]{0}', space=vmem, size = 0x1400, scoped, tag = 'input window, operand 0, single buffered']
    #allocation3 [shape = 's32[1]{0}', space=sflag, size = 0x4, scoped, tag = 'scoped memory for tpu_custom_call.1']
    #allocation4 [shape = 's32[1]{0}', space=sflag, size = 0x4, scoped, tag = 'scoped memory for tpu_custom_call.1']
    #allocation5 [shape = 'u8[81920]{0}', space=vmem, size = 0x14000, scoped, tag = 'input window, operand 1, single buffered']
    #allocation6 [shape = 's32[1]{0}', space=sflag, size = 0x4, scoped, tag = 'scoped memory for tpu_custom_call.1']
    #allocation7 [shape = 'u8[8192]{0}', space=vmem, size = 0x2000, scoped, tag = 'input window, operand 2, single buffered']
    #allocation8 [shape = 'u8[327680]{0}', space=vmem, size = 0x50000, scoped, tag = 'output window, operand 0, single buffered']
    %8 = vsyncpa [#allocation3], 0
    %9 = vsyncpa [#allocation6], 0
    %10 = vsyncpa [#allocation4], 0
    // Predicated region
    $region2: #{tpu_custom_call.1} parent=1 // pred_check
      _
    $region3: #{tpu_custom_call.1} parent=1 // pred_check_branch
      %12 = sbr.rel (0) target = $region5
    $region4: #{tpu_custom_call.1} parent=1 // pred_region
      %s14 = ssub.s32 160, 160
      %15 = vsyncadd [#allocation3], %s14
      %s16 = sshll.u32 [#allocation2], 4
      %s17 = int_to_ptr.vmem [resolvable:$true] %s16
      %22 = dma.hbm_to_vmem [thread:$0]  %s0, 160, %s17, [#allocation3], 16, 16, 1
    $region5: #{tpu_custom_call.1} parent=1 // pred_fallthru
      _
    // Predicated region
    $region6: #{tpu_custom_call.1} parent=1 // pred_check
      _
    $region7: #{tpu_custom_call.1} parent=1 // pred_check_branch
      %24 = sbr.rel (0) target = $region9
    $region8: #{tpu_custom_call.1} parent=1 // pred_region
      %s26 = ssub.s32 2560, 2560
      %27 = vsyncadd [#allocation6], %s26
      %s28 = sshll.u32 [#allocation5], 4
      %s29 = int_to_ptr.vmem [resolvable:$true] %s28
      %34 = dma.hbm_to_vmem [thread:$0]  %s1, 2560, %s29, [#allocation6], 128, 128, 8
    $region9: #{tpu_custom_call.1} parent=1 // pred_fallthru
      _
    // Predicated region
    $region10: #{tpu_custom_call.1} parent=1 // pred_check
      _
    $region11: #{tpu_custom_call.1} parent=1 // pred_check_branch
      %36 = sbr.rel (0) target = $region13
    $region12: #{tpu_custom_call.1} parent=1 // pred_region
      %s38 = ssub.s32 256, 256
      %39 = vsyncadd [#allocation6], %s38
      %s40 = sshll.u32 [#allocation7], 4
      %s41 = int_to_ptr.vmem [resolvable:$true] %s40
      %46 = dma.hbm_to_vmem [thread:$0]  %s2, 256, %s41, [#allocation6], 64, 64, 4
    $region13: #{tpu_custom_call.1} parent=1 // pred_fallthru
      _
    // Predicated region
    $region14: #{tpu_custom_call.1} parent=1 // pred_check
      _
    $region15: #{tpu_custom_call.1} parent=1 // pred_check_branch
      %48 = sbr.rel (0) target = $region17
    $region16: #{tpu_custom_call.1} parent=1 // pred_region
      %49 = dma.done [#allocation3], 160
    $region17: #{tpu_custom_call.1} parent=1 // pred_fallthru
      _
    // Predicated region
    $region18: #{tpu_custom_call.1} parent=1 // pred_check
      _
    $region19: #{tpu_custom_call.1} parent=1 // pred_check_branch
      %51 = sbr.rel (0) target = $region21
    $region20: #{tpu_custom_call.1} parent=1 // pred_region
      %52 = dma.done [#allocation6], 2560
    $region21: #{tpu_custom_call.1} parent=1 // pred_fallthru
      _
    // Predicated region
    $region22: #{tpu_custom_call.1} parent=1 // pred_check
      _
    $region23: #{tpu_custom_call.1} parent=1 // pred_check_branch
      %54 = sbr.rel (0) target = $region25
    $region24: #{tpu_custom_call.1} parent=1 // pred_region
      %55 = dma.done [#allocation6], 256
    $region25: #{tpu_custom_call.1} parent=1 // pred_fallthru
      _
    %v56 = vld [vmem:[#allocation2] sm:$0x1]
    %v57 = vld [vmem:[#allocation2 + $0x1] sm:$0x1]
    %v58 = vld [vmem:[#allocation2 + $0x2] sm:$0x1]
    %v59 = vld [vmem:[#allocation2 + $0x3] sm:$0x1]
    %v60 = vld [vmem:[#allocation2 + $0x4] sm:$0x1]
    %v61 = vld [vmem:[#allocation2 + $0x5] sm:$0x1]
    %v62 = vld [vmem:[#allocation2 + $0x6] sm:$0x1]
    %v63 = vld [vmem:[#allocation2 + $0x7] sm:$0x1]
    %v64 = vld [vmem:[#allocation2 + $0x8] sm:$0x1]
    %v65 = vld [vmem:[#allocation2 + $0x9] sm:$0x1]
    %v66 = vld [vmem:[#allocation5] sm:$0xff]
    %v67 = vld [vmem:[#allocation5 + $0x8] sm:$0x7]
    %v68 = vld [vmem:[#allocation5 + $0x10] sm:$0xff]
    %v69 = vld [vmem:[#allocation5 + $0x18] sm:$0x7]
    %v70 = vld [vmem:[#allocation5 + $0x20] sm:$0xff]
    %v71 = vld [vmem:[#allocation5 + $0x28] sm:$0x7]
    %v72 = vld [vmem:[#allocation5 + $0x30] sm:$0xff]
    %v73 = vld [vmem:[#allocation5 + $0x38] sm:$0x7]
    %v74 = vld [vmem:[#allocation5 + $0x40] sm:$0xff]
    %v75 = vld [vmem:[#allocation5 + $0x48] sm:$0x7]
    %v76 = vld [vmem:[#allocation5 + $0x50] sm:$0xff]
    %v77 = vld [vmem:[#allocation5 + $0x58] sm:$0x7]
    %v78 = vld [vmem:[#allocation5 + $0x60] sm:$0xff]
    %v79 = vld [vmem:[#allocation5 + $0x68] sm:$0x7]
    %v80 = vld [vmem:[#allocation5 + $0x70] sm:$0xff]
    %v81 = vld [vmem:[#allocation5 + $0x78] sm:$0x7]
    %v82 = vld [vmem:[#allocation5 + $0x80] sm:$0xff]
    %v83 = vld [vmem:[#allocation5 + $0x88] sm:$0x7]
    %v84 = vld [vmem:[#allocation5 + $0x90] sm:$0xff]
    %v85 = vld [vmem:[#allocation5 + $0x98] sm:$0x7]
    %86 = vst [vmem:[#allocation8] sm:$0x1] %v56
    %87 = vst [vmem:[#allocation8 + $0x40] sm:$0x1] %v57
    %88 = vst [vmem:[#allocation8 + $0x80] sm:$0x1] %v58
    %89 = vst [vmem:[#allocation8 + $0xc0] sm:$0x1] %v59
    %90 = vst [vmem:[#allocation8 + $0x100] sm:$0x1] %v60
    %91 = vst [vmem:[#allocation8 + $0x140] sm:$0x1] %v61
    %92 = vst [vmem:[#allocation8 + $0x180] sm:$0x1] %v62
    %93 = vst [vmem:[#allocation8 + $0x1c0] sm:$0x1] %v63
    %94 = vst [vmem:[#allocation8 + $0x200] sm:$0x1] %v64
    %95 = vst [vmem:[#allocation8 + $0x240] sm:$0x1] %v65
    %v96 = vld [vmem:[#allocation7] sm:$0xf]
    %97 = vst [vmem:[#allocation8 + $0x1] sm:$0xf] %v96
    %98 = vst [vmem:[#allocation8 + $0x41] sm:$0xf] %v96
    %99 = vst [vmem:[#allocation8 + $0x81] sm:$0xf] %v96
    %100 = vst [vmem:[#allocation8 + $0xc1] sm:$0xf] %v96
    %101 = vst [vmem:[#allocation8 + $0x101] sm:$0xf] %v96
    %102 = vst [vmem:[#allocation8 + $0x141] sm:$0xf] %v96
    %103 = vst [vmem:[#allocation8 + $0x181] sm:$0xf] %v96
    %104 = vst [vmem:[#allocation8 + $0x1c1] sm:$0xf] %v96
    %105 = vst [vmem:[#allocation8 + $0x201] sm:$0xf] %v96
    %106 = vst [vmem:[#allocation8 + $0x241] sm:$0xf] %v96
    %107 = vst [vmem:[#allocation8 + $0x5] sm:$0xff] %v66
    %108 = vst [vmem:[#allocation8 + $0xd] sm:$0x7] %v67
    %109 = vst [vmem:[#allocation8 + $0x45] sm:$0xff] %v68
    %110 = vst [vmem:[#allocation8 + $0x4d] sm:$0x7] %v69
    %111 = vst [vmem:[#allocation8 + $0x85] sm:$0xff] %v70
    %112 = vst [vmem:[#allocation8 + $0x8d] sm:$0x7] %v71
    %113 = vst [vmem:[#allocation8 + $0xc5] sm:$0xff] %v72
    %114 = vst [vmem:[#allocation8 + $0xcd] sm:$0x7] %v73
    %115 = vst [vmem:[#allocation8 + $0x105] sm:$0xff] %v74
    %116 = vst [vmem:[#allocation8 + $0x10d] sm:$0x7] %v75
    %117 = vst [vmem:[#allocation8 + $0x145] sm:$0xff] %v76
    %118 = vst [vmem:[#allocation8 + $0x14d] sm:$0x7] %v77
    %119 = vst [vmem:[#allocation8 + $0x185] sm:$0xff] %v78
    %120 = vst [vmem:[#allocation8 + $0x18d] sm:$0x7] %v79
    %121 = vst [vmem:[#allocation8 + $0x1c5] sm:$0xff] %v80
    %122 = vst [vmem:[#allocation8 + $0x1cd] sm:$0x7] %v81
    %123 = vst [vmem:[#allocation8 + $0x205] sm:$0xff] %v82
    %124 = vst [vmem:[#allocation8 + $0x20d] sm:$0x7] %v83
    %125 = vst [vmem:[#allocation8 + $0x245] sm:$0xff] %v84
    %126 = vst [vmem:[#allocation8 + $0x24d] sm:$0x7] %v85
    %s127 = scalar_lea.vmem [#allocation8], 16
    %128 = vst [vmem:[%s127] sm:$0x1] %v56
    %129 = vst [vmem:[%s127 + $0x40] sm:$0x1] %v57
    %130 = vst [vmem:[%s127 + $0x80] sm:$0x1] %v58
    %131 = vst [vmem:[%s127 + $0xc0] sm:$0x1] %v59
    %132 = vst [vmem:[%s127 + $0x100] sm:$0x1] %v60
    %133 = vst [vmem:[%s127 + $0x140] sm:$0x1] %v61
    %134 = vst [vmem:[%s127 + $0x180] sm:$0x1] %v62
    %135 = vst [vmem:[%s127 + $0x1c0] sm:$0x1] %v63
    %136 = vst [vmem:[%s127 + $0x200] sm:$0x1] %v64
    %137 = vst [vmem:[%s127 + $0x240] sm:$0x1] %v65
    %s138 = scalar_lea.vmem [#allocation7], 4
    %v139 = vld [vmem:[%s138] sm:$0xf]
    %140 = vst [vmem:[%s127 + $0x1] sm:$0xf] %v139
    %141 = vst [vmem:[%s127 + $0x41] sm:$0xf] %v139
    %142 = vst [vmem:[%s127 + $0x81] sm:$0xf] %v139
    %143 = vst [vmem:[%s127 + $0xc1] sm:$0xf] %v139
    %144 = vst [vmem:[%s127 + $0x101] sm:$0xf] %v139
    %145 = vst [vmem:[%s127 + $0x141] sm:$0xf] %v139
    %146 = vst [vmem:[%s127 + $0x181] sm:$0xf] %v139
    %147 = vst [vmem:[%s127 + $0x1c1] sm:$0xf] %v139
    %148 = vst [vmem:[%s127 + $0x201] sm:$0xf] %v139
    %149 = vst [vmem:[%s127 + $0x241] sm:$0xf] %v139
    %150 = vst [vmem:[%s127 + $0x5] sm:$0xff] %v66
    %151 = vst [vmem:[%s127 + $0xd] sm:$0x7] %v67
    %152 = vst [vmem:[%s127 + $0x45] sm:$0xff] %v68
    %153 = vst [vmem:[%s127 + $0x4d] sm:$0x7] %v69
    %154 = vst [vmem:[%s127 + $0x85] sm:$0xff] %v70
    %155 = vst [vmem:[%s127 + $0x8d] sm:$0x7] %v71
    %156 = vst [vmem:[%s127 + $0xc5] sm:$0xff] %v72
    %157 = vst [vmem:[%s127 + $0xcd] sm:$0x7] %v73
    %158 = vst [vmem:[%s127 + $0x105] sm:$0xff] %v74
    %159 = vst [vmem:[%s127 + $0x10d] sm:$0x7] %v75
    %160 = vst [vmem:[%s127 + $0x145] sm:$0xff] %v76
    %161 = vst [vmem:[%s127 + $0x14d] sm:$0x7] %v77
    %162 = vst [vmem:[%s127 + $0x185] sm:$0xff] %v78
    %163 = vst [vmem:[%s127 + $0x18d] sm:$0x7] %v79
    %164 = vst [vmem:[%s127 + $0x1c5] sm:$0xff] %v80
    %165 = vst [vmem:[%s127 + $0x1cd] sm:$0x7] %v81
    %166 = vst [vmem:[%s127 + $0x205] sm:$0xff] %v82
    %167 = vst [vmem:[%s127 + $0x20d] sm:$0x7] %v83
    %168 = vst [vmem:[%s127 + $0x245] sm:$0xff] %v84
    %169 = vst [vmem:[%s127 + $0x24d] sm:$0x7] %v85
    %s170 = scalar_lea.vmem [#allocation8], 32
    %171 = vst [vmem:[%s170] sm:$0x1] %v56
    %172 = vst [vmem:[%s170 + $0x40] sm:$0x1] %v57
    %173 = vst [vmem:[%s170 + $0x80] sm:$0x1] %v58
    %174 = vst [vmem:[%s170 + $0xc0] sm:$0x1] %v59
    %175 = vst [vmem:[%s170 + $0x100] sm:$0x1] %v60
    %176 = vst [vmem:[%s170 + $0x140] sm:$0x1] %v61
    %177 = vst [vmem:[%s170 + $0x180] sm:$0x1] %v62
    %178 = vst [vmem:[%s170 + $0x1c0] sm:$0x1] %v63
    %179 = vst [vmem:[%s170 + $0x200] sm:$0x1] %v64
    %180 = vst [vmem:[%s170 + $0x240] sm:$0x1] %v65
    %s181 = scalar_lea.vmem [#allocation7], 8
    %v182 = vld [vmem:[%s181] sm:$0xf]
    %183 = vst [vmem:[%s170 + $0x1] sm:$0xf] %v182
    %184 = vst [vmem:[%s170 + $0x41] sm:$0xf] %v182
    %185 = vst [vmem:[%s170 + $0x81] sm:$0xf] %v182
    %186 = vst [vmem:[%s170 + $0xc1] sm:$0xf] %v182
    %187 = vst [vmem:[%s170 + $0x101] sm:$0xf] %v182
    %188 = vst [vmem:[%s170 + $0x141] sm:$0xf] %v182
    %189 = vst [vmem:[%s170 + $0x181] sm:$0xf] %v182
    %190 = vst [vmem:[%s170 + $0x1c1] sm:$0xf] %v182
    %191 = vst [vmem:[%s170 + $0x201] sm:$0xf] %v182
    %192 = vst [vmem:[%s170 + $0x241] sm:$0xf] %v182
    %193 = vst [vmem:[%s170 + $0x5] sm:$0xff] %v66
    %194 = vst [vmem:[%s170 + $0xd] sm:$0x7] %v67
    %195 = vst [vmem:[%s170 + $0x45] sm:$0xff] %v68
    %196 = vst [vmem:[%s170 + $0x4d] sm:$0x7] %v69
    %197 = vst [vmem:[%s170 + $0x85] sm:$0xff] %v70
    %198 = vst [vmem:[%s170 + $0x8d] sm:$0x7] %v71
    %199 = vst [vmem:[%s170 + $0xc5] sm:$0xff] %v72
    %200 = vst [vmem:[%s170 + $0xcd] sm:$0x7] %v73
    %201 = vst [vmem:[%s170 + $0x105] sm:$0xff] %v74
    %202 = vst [vmem:[%s170 + $0x10d] sm:$0x7] %v75
    %203 = vst [vmem:[%s170 + $0x145] sm:$0xff] %v76
    %204 = vst [vmem:[%s170 + $0x14d] sm:$0x7] %v77
    %205 = vst [vmem:[%s170 + $0x185] sm:$0xff] %v78
    %206 = vst [vmem:[%s170 + $0x18d] sm:$0x7] %v79
    %207 = vst [vmem:[%s170 + $0x1c5] sm:$0xff] %v80
    %208 = vst [vmem:[%s170 + $0x1cd] sm:$0x7] %v81
    %209 = vst [vmem:[%s170 + $0x205] sm:$0xff] %v82
    %210 = vst [vmem:[%s170 + $0x20d] sm:$0x7] %v83
    %211 = vst [vmem:[%s170 + $0x245] sm:$0xff] %v84
    %212 = vst [vmem:[%s170 + $0x24d] sm:$0x7] %v85
    %s213 = scalar_lea.vmem [#allocation8], 48
    %214 = vst [vmem:[%s213] sm:$0x1] %v56
    %215 = vst [vmem:[%s213 + $0x40] sm:$0x1] %v57
    %216 = vst [vmem:[%s213 + $0x80] sm:$0x1] %v58
    %217 = vst [vmem:[%s213 + $0xc0] sm:$0x1] %v59
    %218 = vst [vmem:[%s213 + $0x100] sm:$0x1] %v60
    %219 = vst [vmem:[%s213 + $0x140] sm:$0x1] %v61
    %220 = vst [vmem:[%s213 + $0x180] sm:$0x1] %v62
    %221 = vst [vmem:[%s213 + $0x1c0] sm:$0x1] %v63
    %222 = vst [vmem:[%s213 + $0x200] sm:$0x1] %v64
    %223 = vst [vmem:[%s213 + $0x240] sm:$0x1] %v65
    %s224 = scalar_lea.vmem [#allocation7], 12
    %v225 = vld [vmem:[%s224] sm:$0xf]
    %226 = vst [vmem:[%s213 + $0x1] sm:$0xf] %v225
    %227 = vst [vmem:[%s213 + $0x41] sm:$0xf] %v225
    %228 = vst [vmem:[%s213 + $0x81] sm:$0xf] %v225
    %229 = vst [vmem:[%s213 + $0xc1] sm:$0xf] %v225
    %230 = vst [vmem:[%s213 + $0x101] sm:$0xf] %v225
    %231 = vst [vmem:[%s213 + $0x141] sm:$0xf] %v225
    %232 = vst [vmem:[%s213 + $0x181] sm:$0xf] %v225
    %233 = vst [vmem:[%s213 + $0x1c1] sm:$0xf] %v225
    %234 = vst [vmem:[%s213 + $0x201] sm:$0xf] %v225
    %235 = vst [vmem:[%s213 + $0x241] sm:$0xf] %v225
    %236 = vst [vmem:[%s213 + $0x5] sm:$0xff] %v66
    %237 = vst [vmem:[%s213 + $0xd] sm:$0x7] %v67
    %238 = vst [vmem:[%s213 + $0x45] sm:$0xff] %v68
    %239 = vst [vmem:[%s213 + $0x4d] sm:$0x7] %v69
    %240 = vst [vmem:[%s213 + $0x85] sm:$0xff] %v70
    %241 = vst [vmem:[%s213 + $0x8d] sm:$0x7] %v71
    %242 = vst [vmem:[%s213 + $0xc5] sm:$0xff] %v72
    %243 = vst [vmem:[%s213 + $0xcd] sm:$0x7] %v73
    %244 = vst [vmem:[%s213 + $0x105] sm:$0xff] %v74
    %245 = vst [vmem:[%s213 + $0x10d] sm:$0x7] %v75
    %246 = vst [vmem:[%s213 + $0x145] sm:$0xff] %v76
    %247 = vst [vmem:[%s213 + $0x14d] sm:$0x7] %v77
    %248 = vst [vmem:[%s213 + $0x185] sm:$0xff] %v78
    %249 = vst [vmem:[%s213 + $0x18d] sm:$0x7] %v79
    %250 = vst [vmem:[%s213 + $0x1c5] sm:$0xff] %v80
    %251 = vst [vmem:[%s213 + $0x1cd] sm:$0x7] %v81
    %252 = vst [vmem:[%s213 + $0x205] sm:$0xff] %v82
    %253 = vst [vmem:[%s213 + $0x20d] sm:$0x7] %v83
    %254 = vst [vmem:[%s213 + $0x245] sm:$0xff] %v84
    %255 = vst [vmem:[%s213 + $0x24d] sm:$0x7] %v85
    // Predicated region
    $region26: #{tpu_custom_call.1} parent=1 // pred_check
      _
    $region27: #{tpu_custom_call.1} parent=1 // pred_check_branch
      %257 = sbr.rel (0) target = $region29
    $region28: #{tpu_custom_call.1} parent=1 // pred_region
      %s259 = ssub.s32 10240, 10240
      %260 = vsyncadd [#allocation4], %s259
      %s261 = sshll.u32 [#allocation8], 4
      %s262 = int_to_ptr.vmem [resolvable:$true] %s261
      %267 = dma.vmem_to_hbm [thread:$0]  %s262, 10240, %s3, [#allocation4], 128, 128, 8
    $region29: #{tpu_custom_call.1} parent=1 // pred_fallthru
      _
    // Predicated region
    $region30: #{tpu_custom_call.1} parent=1 // pred_check
      _
    $region31: #{tpu_custom_call.1} parent=1 // pred_check_branch
      %269 = sbr.rel (0) target = $region33
    $region32: #{tpu_custom_call.1} parent=1 // pred_region
      %270 = dma.done [#allocation4], 10240
    $region33: #{tpu_custom_call.1} parent=1 // pred_fallthru
      _
    %271 = vsyncpa [#allocation3], 1
    %272 = vsyncpa [#allocation6], 1
    %273 = vsyncpa [#allocation4], 1

</llo_original>
